<compile_context>
chip_gen: v7x
topology: tpu7x:2x2x1
jax: 0.10.0
libtpu: 0.0.40
codegen_flags: <defaults>
</compile_context>

<pallas_src>
import math
import jax
import jax.numpy as jnp
from jax.experimental import pallas as pl
from jax.experimental.pallas import tpu as pltpu


def pos_encoding_kernel(x_ref, pe_ref, o_ref):
    # x_ref: (bt, Lt)  pe_ref: (1, Lt) f32  ->  broadcast add along rows (pure VPU work).
    # Accumulate in f32, cast back to the activation dtype on store.
    o_ref[...] = (x_ref[...].astype(jnp.float32) + pe_ref[...]).astype(o_ref.dtype)


def _vmem_capacity_bytes():
    # Per-generation VMEM (128 MiB v5e/v6e, 64 MiB v7x); conservative fallback if the
    # query is unavailable.
    try:
        return int(pltpu.get_tpu_info().vmem_capacity_bytes)
    except Exception:
        return 64 << 20


def positional_encoding(x, pe):
    """x: (B, S, D) activations; pe: (max_len, D) PE table. Returns x + pe[:S]."""
    B, S, D = x.shape
    assert pe.shape[0] >= S and pe.shape[1] == D

    # Wrapper-side layout plumbing (free): slice PE to seq_len, flatten lane-dense to
    # (1, S*D) in f32; flatten x to (B, S*D) so the lane dim is S*D, not D.
    L = S * D
    pe_sd = pe[:S].astype(jnp.float32).reshape(1, L)
    x2 = x.reshape(B, L)

    itemsize = x.dtype.itemsize
    sub = max(8, (8 * 4) // itemsize)          # sublane multiple: 8 f32 / 16 bf16 / 32 int8

    vmem_cap = _vmem_capacity_bytes()
    # ~2 MiB per x tile keeps 2x(x) + 2x(out) double-buffers + PE well under the scoped
    # limit on every generation (v5e 16 MiB default .. v7x 64 MiB physical) while staying
    # in the measured 85%+ HBM-roofline regime.
    tile_budget = min(2 << 20, max(256 << 10, vmem_cap // 16))

    # Lane-axis split (128-multiple chunks) so even one row block fits the budget with at
    # least `sub` rows. Only possible when L is a multiple of 128 (BlockSpec constraint);
    # otherwise fall back to the full lane extent.
    max_lanes = max(128, (tile_budget // (sub * itemsize)) // 128 * 128)
    if L % 128 == 0 and L > max_lanes:
        Lt = max_lanes
    else:
        Lt = L
    grid_l = pl.cdiv(L, Lt)

    # Row-axis split: fit the budget, keep sublane alignment, and leave >= 2 row blocks
    # for medium/large inputs so both v7x TensorCores get work.
    row_bytes = Lt * itemsize
    bt = max(1, min(B, tile_budget // max(1, row_bytes)))
    if bt < B:
        bt = max(sub, (bt // sub) * sub)
        bt = min(bt, B)
    if B >= 2 * sub and B * L * itemsize >= (1 << 20) and bt > (B + 1) // 2:
        bt = max(sub, (((B + 1) // 2) // sub) * sub)
    grid_b = pl.cdiv(B, bt)

    cost = pl.CostEstimate(
        flops=B * L,
        transcendentals=0,
        bytes_accessed=2 * B * L * itemsize + L * 4,
    )

    out = pl.pallas_call(
        pos_encoding_kernel,
        out_shape=jax.ShapeDtypeStruct((B, L), x.dtype),
        grid=(grid_b, grid_l),
        in_specs=[
            pl.BlockSpec((bt, Lt), lambda i, j: (i, j)),   # x rows x lane chunk
            pl.BlockSpec((1, Lt), lambda i, j: (0, j)),    # PE (replicated across rows)
        ],
        out_specs=pl.BlockSpec((bt, Lt), lambda i, j: (i, j)),
        input_output_aliases={0: 0},                        # write back into the x slab
        cost_estimate=cost,
        compiler_params=pltpu.CompilerParams(
            # Both axes are independent; "parallel" lets v7x shard across its 2 TCs.
            dimension_semantics=("parallel", "parallel"),
            vmem_limit_bytes=min(64 << 20, (vmem_cap * 3) // 4),
        ),
    )(x2, pe_sd)
    return out.reshape(B, S, D)


def make_positional_encoding(max_len, d_model, pe_scale_factor=0.1):
    # Faithful transcription of the PyTorch buffer construction.
    pos = jnp.arange(max_len, dtype=jnp.float32)[:, None]
    div = jnp.exp(jnp.arange(0, d_model, 2, dtype=jnp.float32)
                  * -(math.log(10000.0) / d_model))
    pe = jnp.zeros((max_len, d_model), jnp.float32)
    pe = pe.at[:, 0::2].set(jnp.sin(pos * div) * pe_scale_factor)
    pe = pe.at[:, 1::2].set(jnp.cos(pos * div) * pe_scale_factor)
    return pe


if __name__ == "__main__":
    B, S, D = 2, 8, 32           # batch, seq_len, d_model
    MAX_LEN = 64                 # PE table length (>= seq_len)

    key = jax.random.PRNGKey(0)
    x = jax.random.normal(key, (B, S, D), jnp.float32)
    pe = make_positional_encoding(MAX_LEN, D, pe_scale_factor=0.1)

    # Pure-JAX reference of PositionalEncoding.forward (dropout = identity), computed
    # before the kernel call (the kernel aliases its flattened input to the output).
    ref = x + pe[None, :S]

    out = jax.block_until_ready(positional_encoding(x, pe))

    assert out.shape == (B, S, D)
    assert jnp.allclose(out, ref, atol=1e-6, rtol=1e-6), "mismatch vs JAX reference"

    print("KERNEL_OK")
</pallas_src>

<mosaic_0001>
module attributes {stable_mosaic.version = 11 : i64} {
  func.func @pos_encoding_kernel(%arg0: i32, %arg1: i32, %arg2: memref<2x256xf32, #tpu.memory_space<vmem>>, %arg3: memref<1x256xf32, #tpu.memory_space<vmem>>, %arg4: memref<2x256xf32, #tpu.memory_space<vmem>>) attributes {dimension_semantics = [#tpu.dimension_semantics<parallel>, #tpu.dimension_semantics<parallel>], iteration_bounds = array<i64: 1, 1>, scalar_prefetch = 0 : i64, scratch_operands = 0 : i64, tpu.core_type = #tpu.core_type<tc>, window_params = [{transform_indices = @transform_0, window_bounds = array<i64: 2, 256>}, {transform_indices = @transform_1, window_bounds = array<i64: 1, 256>}, {transform_indices = @transform_2, window_bounds = array<i64: 2, 256>}]} {
    %c0 = arith.constant 0 : index
    %c0_0 = arith.constant 0 : index
    %0 = vector.load %arg2[%c0, %c0_0] : memref<2x256xf32, #tpu.memory_space<vmem>>, vector<2x256xf32>
    %c0_1 = arith.constant 0 : index
    %c0_2 = arith.constant 0 : index
    %1 = vector.load %arg3[%c0_1, %c0_2] : memref<1x256xf32, #tpu.memory_space<vmem>>, vector<1x256xf32>
    %2 = vector.broadcast %1 : vector<1x256xf32> to vector<2x256xf32>
    %3 = arith.addf %0, %2 : vector<2x256xf32>
    %c0_3 = arith.constant 0 : index
    %c0_4 = arith.constant 0 : index
    %4 = vector.load %arg4[%c0_3, %c0_4] : memref<2x256xf32, #tpu.memory_space<vmem>>, vector<2x256xf32>
    tpu.vector_store %arg4[%c0_3, %c0_4], %3 {strides = array<i32>} : memref<2x256xf32, #tpu.memory_space<vmem>>, vector<2x256xf32>,
    return
  }
  func.func @transform_0(%arg0: i32, %arg1: i32) -> (i32, i32) {
    %c0_i32 = arith.constant 0 : i32
    return %arg0, %arg1 : i32, i32
  }
  func.func @transform_1(%arg0: i32, %arg1: i32) -> (i32, i32) {
    %c0_i32 = arith.constant 0 : i32
    %c0_i32_0 = arith.constant 0 : i32
    return %c0_i32, %arg1 : i32, i32
  }
  func.func @transform_2(%arg0: i32, %arg1: i32) -> (i32, i32) {
    %c0_i32 = arith.constant 0 : i32
    return %arg0, %arg1 : i32, i32
  }
}

</mosaic_0001>

<llo_original>
// kernel: tpu_custom_call.1
$region0: #{tpu_custom_call.1}
  #allocation0 [shape = 'u32[]', space=smem, size = 0x4, offset = 0x4, fixed_abs, tag = 'smem constant byte address 0x4 - core index']
  #allocation1 [shape = 'u32[144,128]{1,0:T(1,128)}', space=vmem, size = 0x12000, scoped, tag = 'internal scratch']
  %s0 = inlined_call_operand.hbm [shape: f32[2,256], index: 0, kind: input, shape index: {}, may-alias: {0,2}]
  %s1 = inlined_call_operand.vmem [shape: f32[1,256], index: 1, kind: input, shape index: {}]
  %s2 = inlined_call_operand.hbm [shape: f32[2,256], index: 2, kind: output, shape index: {}, may-alias: {0,2}]
  %s3 = sld [smem:[#allocation0]]
  $region22: #{tpu_custom_call.1} parent=0
    _
  %s5 = ssub.s32 1, %s3
  %s6 = scalar_select 0, %s5, %s3
  $region1: #{tpu_custom_call.1} parent=0
    #allocation2 [shape = 'u8[2048]{0}', space=vmem, size = 0x800, scoped, tag = 'input window, operand 0, single buffered']
    #allocation3 [shape = 's32[1]{0}', space=sflag, size = 0x4, scoped, tag = 'scoped memory for tpu_custom_call.1']
    #allocation4 [shape = 's32[1]{0}', space=sflag, size = 0x4, scoped, tag = 'scoped memory for tpu_custom_call.1']
    #allocation5 [shape = 'u8[2048]{0}', space=vmem, size = 0x800, scoped, tag = 'output window, operand 0, single buffered']
    %7 = vsyncpa [#allocation3], 0
    %8 = vsyncpa [#allocation4], 0
    // Predicated region
    $region2: #{tpu_custom_call.1} parent=1 // pred_check
      _
    $region3: #{tpu_custom_call.1} parent=1 // pred_check_branch
      %10 = sbr.rel (0) target = $region5
    $region4: #{tpu_custom_call.1} parent=1 // pred_region
      %s12 = ssub.s32 64, 64
      %13 = vsyncadd [#allocation3], %s12
      %s15 = sshll.u32 [#allocation2], 4
      %s16 = int_to_ptr.vmem [resolvable:$true] %s15
      %18 = dma.hbm_to_vmem [thread:$0]  %s0, 64, %s16, [#allocation3]
    $region5: #{tpu_custom_call.1} parent=1 // pred_fallthru
      _
    // Predicated region
    $region6: #{tpu_custom_call.1} parent=1 // pred_check
      _
    $region7: #{tpu_custom_call.1} parent=1 // pred_check_branch
      %20 = sbr.rel (0) target = $region9
    $region8: #{tpu_custom_call.1} parent=1 // pred_region
      _
    $region9: #{tpu_custom_call.1} parent=1 // pred_fallthru
      _
    // Predicated region
    $region10: #{tpu_custom_call.1} parent=1 // pred_check
      _
    $region11: #{tpu_custom_call.1} parent=1 // pred_check_branch
      %22 = sbr.rel (0) target = $region13
    $region12: #{tpu_custom_call.1} parent=1 // pred_region
      %23 = dma.done [#allocation3], 64
    $region13: #{tpu_custom_call.1} parent=1 // pred_fallthru
      _
    %v24 = vld [vmem:[#allocation2] sm:$0xf]
    %v25 = vld [vmem:[%s1] sm:$0x3]
    %v27 = vlaneseq
    %v28 = vshrl.u32 %v27, 7
    %v29 = vsub.s32 0, %v28
    %v30 = vrot.slane %v25, %v29
    %v31 = vlaneseq
    %v32 = vshrl.u32 %v31, 7
    %v33 = vsub.s32 1, %v32
    %v34 = vrot.slane %v25, %v33
    %v35 = vcombine.low %v30, %v34
    %v37 = vunpack.c.l.s4 1983009808
    %v38 = vunpack.c.0.s8 %v37
    %v39 = vlaneseq
    %v40 = vshrl.u32 %v39, 7
    %v41 = vsub.s32 %v38, %v40
    %v42 = vrot.slane %v35, %v41
    %v44 = vadd.f32 %v24, %v42
    %45 = vst [vmem:[#allocation5] sm:$0xf] %v44
    // Predicated region
    $region14: #{tpu_custom_call.1} parent=1 // pred_check
      _
    $region15: #{tpu_custom_call.1} parent=1 // pred_check_branch
      %47 = sbr.rel (0) target = $region17
    $region16: #{tpu_custom_call.1} parent=1 // pred_region
      %s49 = ssub.s32 64, 64
      %50 = vsyncadd [#allocation4], %s49
      %s52 = sshll.u32 [#allocation5], 4
      %s53 = int_to_ptr.vmem [resolvable:$true] %s52
      %55 = dma.vmem_to_hbm [thread:$0]  %s53, 64, %s2, [#allocation4]
    $region17: #{tpu_custom_call.1} parent=1 // pred_fallthru
      _
    // Predicated region
    $region18: #{tpu_custom_call.1} parent=1 // pred_check
      _
    $region19: #{tpu_custom_call.1} parent=1 // pred_check_branch
      %57 = sbr.rel (0) target = $region21
    $region20: #{tpu_custom_call.1} parent=1 // pred_region
      %58 = dma.done [#allocation4], 64
    $region21: #{tpu_custom_call.1} parent=1 // pred_fallthru
      _
    %59 = vsyncpa [#allocation3], 1
    %60 = vsyncpa [#allocation4], 1

</llo_original>
